<compile_context>
chip_gen: v5e
topology: v5e:2x2
jax: 0.10.0
libtpu: 0.0.40
codegen_flags: <defaults>
</compile_context>

<pallas_src>
import functools
import math

import jax
import jax.numpy as jnp
from jax import lax
from jax.experimental import pallas as pl
from jax.experimental.pallas import tpu as pltpu


def _apa_flash_kernel(q_ref, k_ref, v_ref, x_res_ref, alpha_ref, o_ref,
                      m_sc, l_sc, acc_sc, *,
                      tk, n_valid, needs_mask, compute_dtype, approx_recip):
    """One (batch, query-tile, key-tile) step of position attention.

    q_ref : (Cq, Tq)  precomputed query projection tile   (compute_dtype)
    k_ref : (Cq, Tk)  precomputed key projection tile     (compute_dtype)
    v_ref : (C,  Tk)  precomputed value projection tile   (compute_dtype)
    x_res_ref : (C, Tq) residual slice of x               (f32)
    alpha_ref : (1, 1) scalar in SMEM
    Scratch: m_sc/l_sc (1, Tq) f32, acc_sc (C, Tq) f32.
    """
    ki = pl.program_id(2)
    nk = pl.num_programs(2)

    # --- init per query tile: reset online-softmax state ---
    @pl.when(ki == 0)
    def _init():
        m_sc[...] = jnp.full_like(m_sc, -jnp.inf)
        l_sc[...] = jnp.zeros_like(l_sc)
        acc_sc[...] = jnp.zeros_like(acc_sc)

    q = q_ref[...]                                                       # (Cq, Tq)
    k = k_ref[...]                                                       # (Cq, Tk)
    v = v_ref[...]                                                       # (C,  Tk)

    # energy^T tile: s_t[m, n] = <k[:, m], q[:, n]>  -> (Tk, Tq), f32 MXU acc.
    s_t = lax.dot_general(k, q, (((0,), (0,)), ((), ())),
                          preferred_element_type=jnp.float32)

    if needs_mask:
        # Padded key columns (spatial size not a tile multiple) -> -inf score.
        key_idx = ki * tk + lax.broadcasted_iota(jnp.int32, s_t.shape, 0)
        s_t = jnp.where(key_idx < n_valid, s_t, -jnp.inf)

    # Online softmax update over the key (sublane) axis; state stays f32.
    m_prev = m_sc[...]                                                   # (1, Tq)
    m_new = jnp.maximum(m_prev, jnp.max(s_t, axis=0, keepdims=True))
    corr = jnp.exp(m_prev - m_new)                                       # f32
    # exp in compute_dtype (bf16 EUP on v6e/v7x); f32 path is unchanged.
    p_t = jnp.exp((s_t - m_new).astype(compute_dtype))                   # (Tk, Tq)

    l_sc[...] = corr * l_sc[...] + jnp.sum(p_t.astype(jnp.float32),
                                           axis=0, keepdims=True)
    acc_sc[...] = corr * acc_sc[...] + lax.dot_general(
        v, p_t, (((1,), (0,)), ((), ())),
        preferred_element_type=jnp.float32)                              # (C, Tq)
    m_sc[...] = m_new

    # --- finalize: normalize, scale by alpha, add residual ---
    @pl.when(ki == nk - 1)
    def _finalize():
        inv_l = pl.reciprocal(l_sc[...], approx=approx_recip)            # (1, Tq)
        out = acc_sc[...] * inv_l                                        # (C, Tq)
        o_ref[...] = (alpha_ref[0, 0] * out + x_res_ref[...]).astype(o_ref.dtype)


def _round_up(n, m):
    return ((n + m - 1) // m) * m


def _vmem_capacity_bytes():
    try:
        return int(pltpu.get_tpu_info().vmem_capacity_bytes)
    except Exception:
        return 64 * 1024 * 1024   # conservative (v7x per-TC) fallback


def _block_vmem_bytes(C, Cq, tq, tk, stream_bytes):
    """Approximate VMEM footprint: double-buffered blocks + scratch."""
    inbufs = 2 * (Cq * tq + Cq * tk + C * tk) * stream_bytes   # q/k/v streams
    inbufs += 2 * C * tq * 4                                   # f32 residual
    outbuf = 2 * C * tq * 4
    scratch = (2 * tq + C * tq) * 4
    return inbufs + outbuf + scratch


def _choose_tiles(N, C, Cq, stream_bytes, vmem_cap):
    """Largest square tile (<= padded N) whose footprint fits ~70% of VMEM."""
    n_ceil = _round_up(N, 128)
    budget = int(vmem_cap * 0.7)
    for t in (1024, 512, 256, 128):
        if t <= n_ceil and _block_vmem_bytes(C, Cq, t, t, stream_bytes) <= budget:
            return t, t
    return 128, 128


def apa_module_pallas(x, x_rgb, params, *, tq=None, tk=None,
                      compute_dtype=jnp.bfloat16):
    """APA_Module forward.  x, x_rgb: (B, C, H, W) float32 -> (B, C, H, W)."""
    wq, bq, wk, bk, wv, bv, alpha = params
    B, C, H, W = x.shape
    N = H * W
    Cq = wq.shape[0]

    x_flat = x.reshape(B, C, N).astype(jnp.float32)
    xr_flat = x_rgb.reshape(B, C, N).astype(jnp.float32)

    wq = jnp.asarray(wq, jnp.float32)
    wk = jnp.asarray(wk, jnp.float32)
    wv = jnp.asarray(wv, jnp.float32)
    bq = jnp.asarray(bq, jnp.float32).reshape(1, Cq, 1)
    bk = jnp.asarray(bk, jnp.float32).reshape(1, Cq, 1)
    bv = jnp.asarray(bv, jnp.float32).reshape(1, C, 1)
    alpha2d = jnp.asarray(alpha, jnp.float32).reshape(1, 1)

    # Hoisted 1x1-conv projections (computed once per batch in XLA, f32),
    # then cast to compute_dtype for streaming / MXU.
    q_proj = (jnp.einsum('oc,bcn->bon', wq, xr_flat) + bq).astype(compute_dtype)
    k_proj = (jnp.einsum('oc,bcn->bon', wk, xr_flat) + bk).astype(compute_dtype)
    v_proj = (jnp.einsum('oc,bcn->bon', wv, x_flat) + bv).astype(compute_dtype)

    stream_bytes = jnp.dtype(compute_dtype).itemsize
    vmem_cap = _vmem_capacity_bytes()
    if tq is None or tk is None:
        auto_tq, auto_tk = _choose_tiles(N, C, Cq, stream_bytes, vmem_cap)
        tq = auto_tq if tq is None else tq
        tk = auto_tk if tk is None else tk
    assert tq % 128 == 0 and tk % 128 == 0, "tiles must be multiples of 128"

    # Pad N up to a common tile multiple; padded key columns are masked -inf
    # in the kernel, padded query columns are sliced off afterwards.
    n_pad = _round_up(N, math.lcm(tq, tk))
    needs_mask = n_pad != N
    if needs_mask:
        pad = ((0, 0), (0, 0), (0, n_pad - N))
        q_proj = jnp.pad(q_proj, pad)
        k_proj = jnp.pad(k_proj, pad)
        v_proj = jnp.pad(v_proj, pad)
        x_res = jnp.pad(x_flat, pad)
    else:
        x_res = x_flat

    # VMEM limit derived from the actual footprint, clamped to the device cap
    # (keeps the same code safe on v7x's 64 MiB and roomy on v5e/v6e's 128 MiB).
    footprint = _block_vmem_bytes(C, Cq, tq, tk, stream_bytes)
    vmem_limit = int(min(max(2 * footprint, 32 * 1024 * 1024),
                         int(vmem_cap * 0.9)))

    grid = (B, n_pad // tq, n_pad // tk)

    kernel = functools.partial(
        _apa_flash_kernel,
        tk=tk, n_valid=N, needs_mask=needs_mask,
        compute_dtype=compute_dtype,
        approx_recip=(jnp.dtype(compute_dtype) != jnp.dtype(jnp.float32)),
    )

    out_flat = pl.pallas_call(
        kernel,
        out_shape=jax.ShapeDtypeStruct((B, C, n_pad), jnp.float32),
        grid_spec=pltpu.PrefetchScalarGridSpec(
            num_scalar_prefetch=0,
            grid=grid,
            in_specs=[
                pl.BlockSpec((pl.Squeezed(), Cq, tq), lambda b, qi, ki: (b, 0, qi)),
                pl.BlockSpec((pl.Squeezed(), Cq, tk), lambda b, qi, ki: (b, 0, ki)),
                pl.BlockSpec((pl.Squeezed(), C, tk), lambda b, qi, ki: (b, 0, ki)),
                pl.BlockSpec((pl.Squeezed(), C, tq), lambda b, qi, ki: (b, 0, qi)),
                pl.BlockSpec(memory_space=pltpu.MemorySpace.SMEM),  # alpha scalar
            ],
            out_specs=pl.BlockSpec((pl.Squeezed(), C, tq),
                                   lambda b, qi, ki: (b, 0, qi)),
            scratch_shapes=[
                pltpu.VMEM((1, tq), jnp.float32),   # running max
                pltpu.VMEM((1, tq), jnp.float32),   # running sum
                pltpu.VMEM((C, tq), jnp.float32),   # output accumulator
            ],
        ),
        compiler_params=pltpu.CompilerParams(
            dimension_semantics=("parallel", "parallel", "arbitrary"),
            vmem_limit_bytes=vmem_limit,
        ),
    )(q_proj, k_proj, v_proj, x_res, alpha2d)

    if needs_mask:
        out_flat = out_flat[:, :, :N]
    return out_flat.reshape(B, C, H, W)


def apa_module_reference(x, x_rgb, params):
    """Pure-JAX reference mirroring the PyTorch APA_Module.forward."""
    wq, bq, wk, bk, wv, bv, alpha = params
    B, C, H, W = x.shape
    N = H * W
    xf = x.reshape(B, C, N)
    xrf = x_rgb.reshape(B, C, N)
    q = jnp.einsum('oc,bcn->bon', wq, xrf) + bq[None]          # (B, Cq, N)
    k = jnp.einsum('oc,bcn->bon', wk, xrf) + bk[None]          # (B, Cq, N)
    v = jnp.einsum('oc,bcn->bon', wv, xf) + bv[None]           # (B, C,  N)
    energy = jnp.einsum('bci,bcj->bij', q, k)                  # (B, N, N)
    attn = jax.nn.softmax(energy, axis=-1)
    out = jnp.einsum('bcn,bmn->bcm', v, attn)                  # (B, C, N)
    out = out.reshape(B, C, H, W)
    return alpha * out + x


def make_params(key, in_dim):
    """Deterministic parameter init matching APA_Module.__init__ shapes."""
    cq = in_dim // 8
    ks = jax.random.split(key, 6)
    scale = 0.1
    wq = scale * jax.random.normal(ks[0], (cq, in_dim), jnp.float32)
    bq = scale * jax.random.normal(ks[1], (cq, 1), jnp.float32)
    wk = scale * jax.random.normal(ks[2], (cq, in_dim), jnp.float32)
    bk = scale * jax.random.normal(ks[3], (cq, 1), jnp.float32)
    wv = scale * jax.random.normal(ks[4], (in_dim, in_dim), jnp.float32)
    bv = scale * jax.random.normal(ks[5], (in_dim, 1), jnp.float32)
    alpha = jnp.zeros((), jnp.float32)   # torch: nn.Parameter(torch.zeros(1))
    return wq, bq, wk, bk, wv, bv, alpha


if __name__ == "__main__":
    # in_dim=16 -> query/key channels = 2; N = 256 with 128-wide tiles gives a
    # (B=2, q_tiles=2, k_tiles=2) grid, exercising the online softmax.
    B, C, H, W = 2, 16, 16, 16
    key = jax.random.PRNGKey(0)
    kx, kxr, kp = jax.random.split(key, 3)
    x = jax.random.normal(kx, (B, C, H, W), jnp.float32)
    x_rgb = jax.random.normal(kxr, (B, C, H, W), jnp.float32)
    params = make_params(kp, C)

    # Faithful run (alpha == 0, as in the PyTorch __init__): output must be x.
    out0 = apa_module_pallas(x, x_rgb, params, tq=128, tk=128)
    jax.block_until_ready(out0)

    # Exercise the attention path with a non-zero alpha; check f32 and bf16
    # compute paths against the pure-JAX reference (explicit 128 tiles and
    # auto-chosen tiles).
    params_nz = params[:-1] + (jnp.asarray(0.5, jnp.float32),)
    out_ref = apa_module_reference(x, x_rgb, params_nz)
    out_f32 = apa_module_pallas(x, x_rgb, params_nz, tq=128, tk=128,
                                compute_dtype=jnp.float32)
    out_bf16 = apa_module_pallas(x, x_rgb, params_nz,
                                 compute_dtype=jnp.bfloat16)
    jax.block_until_ready((out_ref, out_f32, out_bf16))

    # Ragged spatial size (N = 144 not a multiple of 128): exercises padding
    # plus in-kernel -inf masking of padded key columns.
    Hr = Wr = 12
    xr_ = jax.random.normal(jax.random.PRNGKey(1), (1, C, Hr, Wr), jnp.float32)
    xrgb_ = jax.random.normal(jax.random.PRNGKey(2), (1, C, Hr, Wr), jnp.float32)
    params_r = params[:-1] + (jnp.asarray(0.7, jnp.float32),)
    out_r_ref = apa_module_reference(xr_, xrgb_, params_r)
    out_r_f32 = apa_module_pallas(xr_, xrgb_, params_r,
                                  compute_dtype=jnp.float32)
    out_r_bf16 = apa_module_pallas(xr_, xrgb_, params_r,
                                   compute_dtype=jnp.bfloat16)
    jax.block_until_ready((out_r_ref, out_r_f32, out_r_bf16))

    assert jnp.allclose(out0, x, atol=1e-5), "alpha=0 path must return x"
    assert jnp.allclose(out_f32, out_ref, atol=2e-3, rtol=2e-3), \
        "f32 kernel mismatch vs reference"
    assert jnp.allclose(out_bf16, out_ref, atol=3e-2, rtol=3e-2), \
        "bf16 kernel mismatch vs reference"
    assert jnp.allclose(out_r_f32, out_r_ref, atol=2e-3, rtol=2e-3), \
        "f32 ragged kernel mismatch vs reference"
    assert jnp.allclose(out_r_bf16, out_r_ref, atol=3e-2, rtol=3e-2), \
        "bf16 ragged kernel mismatch vs reference"

    print("KERNEL_OK")
</pallas_src>

<mosaic_0001>
module attributes {stable_mosaic.version = 11 : i64} {
  func.func @_apa_flash_kernel(%arg0: i32, %arg1: i32, %arg2: i32, %arg3: memref<1x2x128xbf16, #tpu.memory_space<vmem>>, %arg4: memref<1x2x128xbf16, #tpu.memory_space<vmem>>, %arg5: memref<1x16x128xbf16, #tpu.memory_space<vmem>>, %arg6: memref<1x16x128xf32, #tpu.memory_space<vmem>>, %arg7: memref<1x1xf32, #tpu.memory_space<smem>>, %arg8: memref<1x16x128xf32, #tpu.memory_space<vmem>>, %arg9: memref<1x128xf32, #tpu.memory_space<vmem>>, %arg10: memref<1x128xf32, #tpu.memory_space<vmem>>, %arg11: memref<16x128xf32, #tpu.memory_space<vmem>>) attributes {dimension_semantics = [#tpu.dimension_semantics<parallel>, #tpu.dimension_semantics<parallel>, #tpu.dimension_semantics<arbitrary>], iteration_bounds = array<i64: 2, 2, 2>, scalar_prefetch = 0 : i64, scratch_operands = 3 : i64, tpu.core_type = #tpu.core_type<tc>, window_params = [{transform_indices = @transform_0, window_bounds = array<i64: 1, 2, 128>}, {transform_indices = @transform_1, window_bounds = array<i64: 1, 2, 128>}, {transform_indices = @transform_2, window_bounds = array<i64: 1, 16, 128>}, {transform_indices = @transform_3, window_bounds = array<i64: 1, 16, 128>}, {transform_indices = @transform_4, window_bounds = array<i64: 1, 1>}, {transform_indices = @transform_5, window_bounds = array<i64: 1, 16, 128>}]} {
    %c0_i32 = arith.constant 0 : i32
    %0 = arith.cmpi eq, %arg2, %c0_i32 : i32
    %1 = arith.extui %0 : i1 to i32
    %c0_i32_0 = arith.constant 0 : i32
    %2 = arith.cmpi ne, %1, %c0_i32_0 : i32
    scf.if %2 {
      %cst_25 = arith.constant 0xFF800000 : f32
      %37 = vector.broadcast %cst_25 : f32 to vector<1x128xf32>
      %c0_26 = arith.constant 0 : index
      %c0_27 = arith.constant 0 : index
      %38 = vector.load %arg9[%c0_26, %c0_27] : memref<1x128xf32, #tpu.memory_space<vmem>>, vector<1x128xf32>
      tpu.vector_store %arg9[%c0_26, %c0_27], %37 {strides = array<i32>} : memref<1x128xf32, #tpu.memory_space<vmem>>, vector<1x128xf32>,
      %cst_28 = arith.constant 0.000000e+00 : f32
      %39 = vector.broadcast %cst_28 : f32 to vector<1x128xf32>
      %c0_29 = arith.constant 0 : index
      %c0_30 = arith.constant 0 : index
      %40 = vector.load %arg10[%c0_29, %c0_30] : memref<1x128xf32, #tpu.memory_space<vmem>>, vector<1x128xf32>
      tpu.vector_store %arg10[%c0_29, %c0_30], %39 {strides = array<i32>} : memref<1x128xf32, #tpu.memory_space<vmem>>, vector<1x128xf32>,
      %cst_31 = arith.constant 0.000000e+00 : f32
      %41 = vector.broadcast %cst_31 : f32 to vector<16x128xf32>
      %c0_32 = arith.constant 0 : index
      %c0_33 = arith.constant 0 : index
      %42 = vector.load %arg11[%c0_32, %c0_33] : memref<16x128xf32, #tpu.memory_space<vmem>>, vector<16x128xf32>
      tpu.vector_store %arg11[%c0_32, %c0_33], %41 {strides = array<i32>} : memref<16x128xf32, #tpu.memory_space<vmem>>, vector<16x128xf32>,
    } else {
    }
    %c0 = arith.constant 0 : index
    %c0_1 = arith.constant 0 : index
    %c0_2 = arith.constant 0 : index
    %3 = vector.load %arg3[%c0, %c0_1, %c0_2] : memref<1x2x128xbf16, #tpu.memory_space<vmem>>, vector<1x2x128xbf16>
    %4 = vector.shape_cast %3 : vector<1x2x128xbf16> to vector<2x128xbf16>
    %c0_3 = arith.constant 0 : index
    %c0_4 = arith.constant 0 : index
    %c0_5 = arith.constant 0 : index
    %5 = vector.load %arg4[%c0_3, %c0_4, %c0_5] : memref<1x2x128xbf16, #tpu.memory_space<vmem>>, vector<1x2x128xbf16>
    %6 = vector.shape_cast %5 : vector<1x2x128xbf16> to vector<2x128xbf16>
    %c0_6 = arith.constant 0 : index
    %c0_7 = arith.constant 0 : index
    %c0_8 = arith.constant 0 : index
    %7 = vector.load %arg5[%c0_6, %c0_7, %c0_8] : memref<1x16x128xbf16, #tpu.memory_space<vmem>>, vector<1x16x128xbf16>
    %8 = vector.shape_cast %7 : vector<1x16x128xbf16> to vector<16x128xbf16>
    %cst = arith.constant dense<0.000000e+00> : vector<128x128xf32>
    %9 = tpu.matmul %6, %4, %cst {dimension_numbers = #tpu.dot_dimension_numbers<[0], [0], [1], [1], [0, 1, 1, 1], [], []>} : vector<2x128xbf16>, vector<2x128xbf16>, vector<128x128xf32> -> vector<128x128xf32>
    %c0_9 = arith.constant 0 : index
    %c0_10 = arith.constant 0 : index
    %10 = vector.load %arg9[%c0_9, %c0_10] : memref<1x128xf32, #tpu.memory_space<vmem>>, vector<1x128xf32>
    %cst_11 = arith.constant dense<0xFF800000> : vector<128xf32>
    %11 = vector.multi_reduction <maximumf>, %9, %cst_11 [0] : vector<128x128xf32> to vector<128xf32>
    %12 = vector.shape_cast %11 : vector<128xf32> to vector<1x128xf32>
    %13 = arith.maximumf %10, %12 : vector<1x128xf32>
    %14 = arith.subf %10, %13 : vector<1x128xf32>
    %15 = math.exp %14 : vector<1x128xf32>
    %16 = vector.broadcast %13 : vector<1x128xf32> to vector<128x128xf32>
    %17 = arith.subf %9, %16 : vector<128x128xf32>
    %18 = arith.truncf %17 : vector<128x128xf32> to vector<128x128xbf16>
    %19 = math.exp %18 : vector<128x128xbf16>
    %c0_12 = arith.constant 0 : index
    %c0_13 = arith.constant 0 : index
    %20 = vector.load %arg10[%c0_12, %c0_13] : memref<1x128xf32, #tpu.memory_space<vmem>>, vector<1x128xf32>
    %21 = arith.mulf %15, %20 : vector<1x128xf32>
    %22 = arith.extf %19 : vector<128x128xbf16> to vector<128x128xf32>
    %cst_14 = arith.constant dense<0.000000e+00> : vector<128xf32>
    %23 = vector.multi_reduction <add>, %22, %cst_14 [0] : vector<128x128xf32> to vector<128xf32>
    %24 = vector.shape_cast %23 : vector<128xf32> to vector<1x128xf32>
    %25 = arith.addf %21, %24 : vector<1x128xf32>
    %c0_15 = arith.constant 0 : index
    %c0_16 = arith.constant 0 : index
    %26 = vector.load %arg10[%c0_15, %c0_16] : memref<1x128xf32, #tpu.memory_space<vmem>>, vector<1x128xf32>
    tpu.vector_store %arg10[%c0_15, %c0_16], %25 {strides = array<i32>} : memref<1x128xf32, #tpu.memory_space<vmem>>, vector<1x128xf32>,
    %c0_17 = arith.constant 0 : index
    %c0_18 = arith.constant 0 : index
    %27 = vector.load %arg11[%c0_17, %c0_18] : memref<16x128xf32, #tpu.memory_space<vmem>>, vector<16x128xf32>
    %28 = vector.broadcast %15 : vector<1x128xf32> to vector<16x128xf32>
    %29 = arith.mulf %28, %27 : vector<16x128xf32>
    %cst_19 = arith.constant dense<0.000000e+00> : vector<16x128xf32>
    %30 = tpu.matmul %8, %19, %cst_19 {dimension_numbers = #tpu.dot_dimension_numbers<[1], [0], [0], [1], [0, 0, 1, 1], [], []>} : vector<16x128xbf16>, vector<128x128xbf16>, vector<16x128xf32> -> vector<16x128xf32>
    %31 = arith.addf %29, %30 : vector<16x128xf32>
    %c0_20 = arith.constant 0 : index
    %c0_21 = arith.constant 0 : index
    %32 = vector.load %arg11[%c0_20, %c0_21] : memref<16x128xf32, #tpu.memory_space<vmem>>, vector<16x128xf32>
    tpu.vector_store %arg11[%c0_20, %c0_21], %31 {strides = array<i32>} : memref<16x128xf32, #tpu.memory_space<vmem>>, vector<16x128xf32>,
    %c0_22 = arith.constant 0 : index
    %c0_23 = arith.constant 0 : index
    %33 = vector.load %arg9[%c0_22, %c0_23] : memref<1x128xf32, #tpu.memory_space<vmem>>, vector<1x128xf32>
    tpu.vector_store %arg9[%c0_22, %c0_23], %13 {strides = array<i32>} : memref<1x128xf32, #tpu.memory_space<vmem>>, vector<1x128xf32>,
    %c1_i32 = arith.constant 1 : i32
    %34 = arith.cmpi eq, %arg2, %c1_i32 : i32
    %35 = arith.extui %34 : i1 to i32
    %c0_i32_24 = arith.constant 0 : i32
    %36 = arith.cmpi ne, %35, %c0_i32_24 : i32
    scf.if %36 {
      %c0_25 = arith.constant 0 : index
      %c0_26 = arith.constant 0 : index
      %37 = vector.load %arg10[%c0_25, %c0_26] : memref<1x128xf32, #tpu.memory_space<vmem>>, vector<1x128xf32>
      %38 = tpu.reciprocal %37 {approx = true} : vector<1x128xf32> -> vector<1x128xf32>
      %c0_27 = arith.constant 0 : index
      %c0_28 = arith.constant 0 : index
      %39 = vector.load %arg11[%c0_27, %c0_28] : memref<16x128xf32, #tpu.memory_space<vmem>>, vector<16x128xf32>
      %40 = vector.broadcast %38 : vector<1x128xf32> to vector<16x128xf32>
      %41 = arith.mulf %39, %40 : vector<16x128xf32>
      %c0_29 = arith.constant 0 : index
      %c0_30 = arith.constant 0 : index
      %42 = memref.load %arg7[%c0_29, %c0_30] : memref<1x1xf32, #tpu.memory_space<smem>>
      %43 = vector.broadcast %42 : f32 to vector<16x128xf32>
      %44 = arith.mulf %43, %41 : vector<16x128xf32>
      %c0_31 = arith.constant 0 : index
      %c0_32 = arith.constant 0 : index
      %c0_33 = arith.constant 0 : index
      %45 = vector.load %arg6[%c0_31, %c0_32, %c0_33] : memref<1x16x128xf32, #tpu.memory_space<vmem>>, vector<1x16x128xf32>
      %46 = vector.shape_cast %45 : vector<1x16x128xf32> to vector<16x128xf32>
      %47 = arith.addf %44, %46 : vector<16x128xf32>
      %c0_34 = arith.constant 0 : index
      %c0_35 = arith.constant 0 : index
      %c0_36 = arith.constant 0 : index
      %48 = vector.load %arg8[%c0_34, %c0_35, %c0_36] : memref<1x16x128xf32, #tpu.memory_space<vmem>>, vector<1x16x128xf32>
      %49 = vector.shape_cast %48 : vector<1x16x128xf32> to vector<16x128xf32>
      %50 = vector.shape_cast %47 : vector<16x128xf32> to vector<1x16x128xf32>
      tpu.vector_store %arg8[%c0_34, %c0_35, %c0_36], %50 {strides = array<i32>} : memref<1x16x128xf32, #tpu.memory_space<vmem>>, vector<1x16x128xf32>,
    } else {
    }
    return
  }
  func.func @transform_0(%arg0: i32, %arg1: i32, %arg2: i32) -> (i32, i32, i32) {
    %c0_i32 = arith.constant 0 : i32
    %c0_i32_0 = arith.constant 0 : i32
    return %arg0, %c0_i32, %arg1 : i32, i32, i32
  }
  func.func @transform_1(%arg0: i32, %arg1: i32, %arg2: i32) -> (i32, i32, i32) {
    %c0_i32 = arith.constant 0 : i32
    %c0_i32_0 = arith.constant 0 : i32
    return %arg0, %c0_i32, %arg2 : i32, i32, i32
  }
  func.func @transform_2(%arg0: i32, %arg1: i32, %arg2: i32) -> (i32, i32, i32) {
    %c0_i32 = arith.constant 0 : i32
    %c0_i32_0 = arith.constant 0 : i32
    return %arg0, %c0_i32, %arg2 : i32, i32, i32
  }
  func.func @transform_3(%arg0: i32, %arg1: i32, %arg2: i32) -> (i32, i32, i32) {
    %c0_i32 = arith.constant 0 : i32
    %c0_i32_0 = arith.constant 0 : i32
    return %arg0, %c0_i32, %arg1 : i32, i32, i32
  }
  func.func @transform_4(%arg0: i32, %arg1: i32, %arg2: i32) -> (i32, i32) {
    %c0_i32 = arith.constant 0 : i32
    %c0_i32_0 = arith.constant 0 : i32
    %c0_i32_1 = arith.constant 0 : i32
    return %c0_i32, %c0_i32_0 : i32, i32
  }
  func.func @transform_5(%arg0: i32, %arg1: i32, %arg2: i32) -> (i32, i32, i32) {
    %c0_i32 = arith.constant 0 : i32
    %c0_i32_0 = arith.constant 0 : i32
    return %arg0, %c0_i32, %arg1 : i32, i32, i32
  }
}

</mosaic_0001>

<llo_original>
// kernel: tpu_custom_call.1
$region0: #{tpu_custom_call.1}
  #allocation0 [shape = 'u32[]', space=smem, size = 0x4, offset = 0x4, fixed_abs, tag = 'smem constant byte address 0x4 - core index']
  #allocation1 [shape = 'u32[72,128]{1,0:T(1,128)}', space=vmem, size = 0x9000, scoped, tag = 'internal scratch']
  #allocation2 [shape = 'f32[1,128]{1,0:T(1,128)}', space=vmem, size = 0x200, scoped, tag = 'scratch operand']
  #allocation3 [shape = 'f32[1,128]{1,0:T(1,128)}', space=vmem, size = 0x200, scoped, tag = 'scratch operand']
  #allocation4 [shape = 'f32[16,128]{1,0:T(8,128)}', space=vmem, size = 0x2000, scoped, tag = 'scratch operand']
  #allocation5 [shape = 'f32[1,1]{1,0:T(1,128)S(6)}', space=smem, size = 0x200, scoped, tag = 'scoped memory for tpu_custom_call.1']
  %s0 = inlined_call_operand.hbm [shape: bf16[2,2,256], index: 0, kind: input, shape index: {}]
  %s1 = inlined_call_operand.hbm [shape: bf16[2,2,256], index: 1, kind: input, shape index: {}]
  %s2 = inlined_call_operand.hbm [shape: bf16[2,16,256], index: 2, kind: input, shape index: {}]
  %s3 = inlined_call_operand.hbm [shape: f32[2,16,256], index: 3, kind: input, shape index: {}]
  %s4 = inlined_call_operand.<no memory space> [shape: f32[1,1], index: 4, kind: input, shape index: {}]
  %s5 = inlined_call_operand.hbm [shape: f32[2,16,256], index: 5, kind: output, shape index: {}]
  %s6 = sld [smem:[#allocation0]]
  $region77: #{tpu_custom_call.1} parent=0
    _
  %s8 = ssub.s32 1, %s6
  %s9 = scalar_select 0, %s8, %s6
  %10 = sst [smem:[#allocation5]] %s4
  $region1: #{tpu_custom_call.1} parent=0
    #allocation6 [shape = 'u8[1024]{0}', space=vmem, size = 0x400, scoped, tag = 'input window, operand 0']
    #allocation7 [shape = 's32[2]{0}', space=sflag, size = 0x8, scoped, tag = 'scoped memory for tpu_custom_call.1']
    #allocation8 [shape = 's32[2]{0}', space=sflag, size = 0x8, scoped, tag = 'scoped memory for tpu_custom_call.1']
    #allocation9 [shape = 'u8[1024]{0}', space=vmem, size = 0x400, scoped, tag = 'input window, operand 1']
    #allocation10 [shape = 's32[2]{0}', space=sflag, size = 0x8, scoped, tag = 'scoped memory for tpu_custom_call.1']
    #allocation11 [shape = 'u8[8192]{0}', space=vmem, size = 0x2000, scoped, tag = 'input window, operand 2']
    #allocation12 [shape = 'u8[16384]{0}', space=vmem, size = 0x4000, scoped, tag = 'input window, operand 3']
    #allocation13 [shape = 's32[2]{0}', space=sflag, size = 0x8, scoped, tag = 'scoped memory for tpu_custom_call.1']
    #allocation14 [shape = 'u8[16384]{0}', space=vmem, size = 0x4000, scoped, tag = 'output window, operand 0']
    %11 = vsyncpa [#allocation7], 0
    %s12 = scalar_lea.sflag [#allocation7], 1
    %13 = vsyncpa %s12, 0
    %14 = vsyncpa [#allocation10], 0
    %s15 = scalar_lea.sflag [#allocation10], 1
    %16 = vsyncpa %s15, 0
    %17 = vsyncpa [#allocation13], 0
    %s18 = scalar_lea.sflag [#allocation13], 1
    %19 = vsyncpa %s18, 0
    %20 = vsyncpa [#allocation8], 0
    %s21 = scalar_lea.sflag [#allocation8], 1
    %22 = vsyncpa %s21, 0
    loop: start=0, step=1, limit=10
    $region2: #{tpu_custom_call.1} parent=1 // loop_pre_header
      _
    $region3: #{tpu_custom_call.1} parent=1 // loop_header
      %s24 = sphi 0, %s28
      %p25 = scmp.ge.s32.totalorder %s24, 10
      %s31 = sphi 0, %s50
      %s32 = sphi 0, %s46
      %s33 = sphi 0, %s42
      %s34 = sphi 0, %s31
      %s35 = sphi 0, %s32
      %s36 = sphi 0, %s33
      %s37 = sphi 0, %s34
      %s38 = sphi 0, %s35
      %s39 = sphi 0, %s36
      %s55 = sphi 0, %s57
      %s58 = sphi 0, %s55
      %s59 = sphi 0, %s58
      %s75 = sphi 0, %s59
      %s83 = sphi 0, %s85
      %s86 = sphi 0, %s83
      %s87 = sphi 0, %s86
      %s103 = sphi 0, %s87
      %s111 = sphi 0, %s113
      %s114 = sphi 0, %s111
      %s115 = sphi 0, %s114
      %s131 = sphi 0, %s115
      %s139 = sphi 0, %s141
      %s142 = sphi 0, %s139
      %s143 = sphi 0, %s142
      %s159 = sphi 0, %s143
      %s163 = sphi 0, %s163
      %s165 = sphi 0, %s163
      %s166 = sphi 0, %s165
      %s180 = sphi 0, %s166
      %s188 = sphi 0, %s190
      %s191 = sphi 0, %s188
      %s192 = sphi 0, %s191
      %s208 = sphi 0, %s192
    $region4: #{tpu_custom_call.1} parent=1 // loop_header_branch
      %27 = sbr.rel (%p25) target = $region8
    $region5: #{tpu_custom_call.1} parent=1 // loop_body
      %s29 = ssub.s32 %s24, 1
      %s30 = ssub.s32 %s24, 2
      %s40 = sadd.s32 1, %s33
      %p41 = scmp.ge.s32.totalorder %s40, 2
      %s42 = scalar_select %p41, 0, %s40
      %s43 = sadd.s32 1, %s32
      %s44 = scalar_select %p41, %s43, %s32
      %p45 = scmp.ge.s32.totalorder %s44, 2
      %s46 = scalar_select %p45, 0, %s44
      %s47 = sadd.s32 1, %s31
      %s48 = scalar_select %p45, %s47, %s31
      %p49 = scmp.ge.s32.totalorder %s48, 2
      %s50 = scalar_select %p49, 0, %s48
      %s51 = ssub.s32 %s31, %s50
      %s52 = ssub.s32 %s32, %s46
      %s53 = sor.u32 %s51, %s52
      %p54 = scmp.eq.s32.totalorder %s53, 0
      %s56 = sadd.s32 %s55, 1
      %s57 = scalar_select %p54, %s55, %s56
      %p60 = pneg %p54
      %p61 = scmp.eq.s32.totalorder %s24, 7
      %p62 = por %p60, %p61
      %p63 = scmp.ne.s32.totalorder %s55, %s58
      %p64 = scmp.eq.s32.totalorder %s24, 0
      %p65 = por %p63, %p64
      %p66 = scmp.ne.s32.totalorder %s55, %s58
      %p67 = scmp.eq.s32.totalorder %s29, 7
      %p68 = por %p66, %p67
      %p69 = scmp.ne.s32.totalorder %s58, %s59
      %p70 = scmp.eq.s32.totalorder %s29, 0
      %p71 = por %p69, %p70
      %p72 = scmp.ne.s32.totalorder %s58, %s59
      %p73 = scmp.eq.s32.totalorder %s30, 7
      %p74 = por %p72, %p73
      %p76 = scmp.ne.s32.totalorder %s59, %s75
      %p77 = scmp.eq.s32.totalorder %s30, 0
      %p78 = por %p76, %p77
      %s79 = ssub.s32 %s31, %s50
      %s80 = ssub.s32 %s33, %s42
      %s81 = sor.u32 %s79, %s80
      %p82 = scmp.eq.s32.totalorder %s81, 0
      %s84 = sadd.s32 %s83, 1
      %s85 = scalar_select %p82, %s83, %s84
      %p88 = pneg %p82
      %p89 = scmp.eq.s32.totalorder %s24, 7
      %p90 = por %p88, %p89
      %p91 = scmp.ne.s32.totalorder %s83, %s86
      %p92 = scmp.eq.s32.totalorder %s24, 0
      %p93 = por %p91, %p92
      %p94 = scmp.ne.s32.totalorder %s83, %s86
      %p95 = scmp.eq.s32.totalorder %s29, 7
      %p96 = por %p94, %p95
      %p97 = scmp.ne.s32.totalorder %s86, %s87
      %p98 = scmp.eq.s32.totalorder %s29, 0
      %p99 = por %p97, %p98
      %p100 = scmp.ne.s32.totalorder %s86, %s87
      %p101 = scmp.eq.s32.totalorder %s30, 7
      %p102 = por %p100, %p101
      %p104 = scmp.ne.s32.totalorder %s87, %s103
      %p105 = scmp.eq.s32.totalorder %s30, 0
      %p106 = por %p104, %p105
      %s107 = ssub.s32 %s31, %s50
      %s108 = ssub.s32 %s33, %s42
      %s109 = sor.u32 %s107, %s108
      %p110 = scmp.eq.s32.totalorder %s109, 0
      %s112 = sadd.s32 %s111, 1
      %s113 = scalar_select %p110, %s111, %s112
      %p116 = pneg %p110
      %p117 = scmp.eq.s32.totalorder %s24, 7
      %p118 = por %p116, %p117
      %p119 = scmp.ne.s32.totalorder %s111, %s114
      %p120 = scmp.eq.s32.totalorder %s24, 0
      %p121 = por %p119, %p120
      %p122 = scmp.ne.s32.totalorder %s111, %s114
      %p123 = scmp.eq.s32.totalorder %s29, 7
      %p124 = por %p122, %p123
      %p125 = scmp.ne.s32.totalorder %s114, %s115
      %p126 = scmp.eq.s32.totalorder %s29, 0
      %p127 = por %p125, %p126
      %p128 = scmp.ne.s32.totalorder %s114, %s115
      %p129 = scmp.eq.s32.totalorder %s30, 7
      %p130 = por %p128, %p129
      %p132 = scmp.ne.s32.totalorder %s115, %s131
      %p133 = scmp.eq.s32.totalorder %s30, 0
      %p134 = por %p132, %p133
      %s135 = ssub.s32 %s31, %s50
      %s136 = ssub.s32 %s32, %s46
      %s137 = sor.u32 %s135, %s136
      %p138 = scmp.eq.s32.totalorder %s137, 0
      %s140 = sadd.s32 %s139, 1
      %s141 = scalar_select %p138, %s139, %s140
      %p144 = pneg %p138
      %p145 = scmp.eq.s32.totalorder %s24, 7
      %p146 = por %p144, %p145
      %p147 = scmp.ne.s32.totalorder %s139, %s142
      %p148 = scmp.eq.s32.totalorder %s24, 0
      %p149 = por %p147, %p148
      %p150 = scmp.ne.s32.totalorder %s139, %s142
      %p151 = scmp.eq.s32.totalorder %s29, 7
      %p152 = por %p150, %p151
      %p153 = scmp.ne.s32.totalorder %s142, %s143
      %p154 = scmp.eq.s32.totalorder %s29, 0
      %p155 = por %p153, %p154
      %p156 = scmp.ne.s32.totalorder %s142, %s143
      %p157 = scmp.eq.s32.totalorder %s30, 7
      %p158 = por %p156, %p157
      %p160 = scmp.ne.s32.totalorder %s143, %s159
      %p161 = scmp.eq.s32.totalorder %s30, 0
      %p162 = por %p160, %p161
      %s164 = sadd.s32 %s163, 1
      %p167 = scmp.eq.s32.totalorder %s24, 7
      %p168 = scmp.ne.s32.totalorder %s163, %s165
      %p169 = scmp.eq.s32.totalorder %s24, 0
      %p170 = por %p168, %p169
      %p171 = scmp.ne.s32.totalorder %s163, %s165
      %p172 = scmp.eq.s32.totalorder %s29, 7
      %p173 = por %p171, %p172
      %p174 = scmp.ne.s32.totalorder %s165, %s166
      %p175 = scmp.eq.s32.totalorder %s29, 0
      %p176 = por %p174, %p175
      %p177 = scmp.ne.s32.totalorder %s165, %s166
      %p178 = scmp.eq.s32.totalorder %s30, 7
      %p179 = por %p177, %p178
      %p181 = scmp.ne.s32.totalorder %s166, %s180
      %p182 = scmp.eq.s32.totalorder %s30, 0
      %p183 = por %p181, %p182
      %s184 = ssub.s32 %s31, %s50
      %s185 = ssub.s32 %s32, %s46
      %s186 = sor.u32 %s184, %s185
      %p187 = scmp.eq.s32.totalorder %s186, 0
      %s189 = sadd.s32 %s188, 1
      %s190 = scalar_select %p187, %s188, %s189
      %p193 = pneg %p187
      %p194 = scmp.eq.s32.totalorder %s24, 7
      %p195 = por %p193, %p194
      %p196 = scmp.ne.s32.totalorder %s188, %s191
      %p197 = scmp.eq.s32.totalorder %s24, 0
      %p198 = por %p196, %p197
      %p199 = scmp.ne.s32.totalorder %s188, %s191
      %p200 = scmp.eq.s32.totalorder %s29, 7
      %p201 = por %p199, %p200
      %p202 = scmp.ne.s32.totalorder %s191, %s192
      %p203 = scmp.eq.s32.totalorder %s29, 0
      %p204 = por %p202, %p203
      %p205 = scmp.ne.s32.totalorder %s191, %s192
      %p206 = scmp.eq.s32.totalorder %s30, 7
      %p207 = por %p205, %p206
      %p209 = scmp.ne.s32.totalorder %s192, %s208
      %p210 = scmp.eq.s32.totalorder %s30, 0
      %p211 = por %p209, %p210
      %p212 = scmp.le.s32.totalorder 1, %s24
      %p213 = scmp.lt.s32.totalorder %s24, 9
      %p214 = pnand %p212, %p213
      %p215 = pneg %p214
      // Predicated region
      $region9: #{tpu_custom_call.1} parent=5 // pred_check
        _
      $region10: #{tpu_custom_call.1} parent=5 // pred_check_branch
        %217 = sbr.rel (%p214) target = $region12
      $region11: #{tpu_custom_call.1} parent=5 // pred_region
        %s218 = ssub.s32 %s24, 1
        // Predicated region
        $region13: #{tpu_custom_call.1} parent=11 // pred_check
          %p219 = pneg %p176
        $region14: #{tpu_custom_call.1} parent=11 // pred_check_branch
          %221 = sbr.rel (%p219) target = $region16
        $region15: #{tpu_custom_call.1} parent=11 // pred_region
          _
        $region16: #{tpu_custom_call.1} parent=11 // pred_fallthru
          _
      $region12: #{tpu_custom_call.1} parent=5 // pred_fallthru
        _
      %p222 = scmp.lt.s32.totalorder %s24, 8
      // Predicated region
      $region17: #{tpu_custom_call.1} parent=5 // pred_check
        %p223 = pneg %p222
      $region18: #{tpu_custom_call.1} parent=5 // pred_check_branch
        %225 = sbr.rel (%p223) target = $region20
      $region19: #{tpu_custom_call.1} parent=5 // pred_region
        // Predicated region
        $region21: #{tpu_custom_call.1} parent=19 // pred_check
          %p226 = pneg %p65
        $region22: #{tpu_custom_call.1} parent=19 // pred_check_branch
          %228 = sbr.rel (%p226) target = $region24
        $region23: #{tpu_custom_call.1} parent=19 // pred_region
          %s229 = sand.u32 %s55, 1
          %s230 = scalar_lea.sflag [#allocation7], %s229
          %s231 = sand.u32 %s55, 1
          %s232 = scalar_lea.vmem [#allocation6], %s231
          %234 = vsyncadd %s230, 0
          %s235 = smul.addr %s31, 2
          %s236 = sadd.s32 %s32, %s235
          %s237 = scalar_lea.hbm %s0, %s236
          %s239 = sshll.u32 %s237, 4
          %s240 = int_to_ptr.hbm [resolvable:$true] %s239
          %s241 = sshll.u32 %s232, 4
          %s242 = int_to_ptr.vmem [resolvable:$true] %s241
          %244 = dma.hbm_to_vmem [thread:$0]  %s240, 16, %s242, %s230
        $region24: #{tpu_custom_call.1} parent=19 // pred_fallthru
          _
        // Predicated region
        $region25: #{tpu_custom_call.1} parent=19 // pred_check
          %p245 = pneg %p93
        $region26: #{tpu_custom_call.1} parent=19 // pred_check_branch
          %247 = sbr.rel (%p245) target = $region28
        $region27: #{tpu_custom_call.1} parent=19 // pred_region
          %s248 = sand.u32 %s24, 1
          %s249 = scalar_lea.sflag [#allocation10], %s248
          %s250 = sand.u32 %s83, 1
          %s251 = scalar_lea.vmem [#allocation9], %s250
          %253 = vsyncadd %s249, 0
          %s254 = smul.addr %s31, 2
          %s255 = sadd.s32 %s33, %s254
          %s256 = scalar_lea.hbm %s1, %s255
          %s258 = sshll.u32 %s256, 4
          %s259 = int_to_ptr.hbm [resolvable:$true] %s258
          %s260 = sshll.u32 %s251, 4
          %s261 = int_to_ptr.vmem [resolvable:$true] %s260
          %263 = dma.hbm_to_vmem [thread:$0]  %s259, 16, %s261, %s249
        $region28: #{tpu_custom_call.1} parent=19 // pred_fallthru
          _
        // Predicated region
        $region29: #{tpu_custom_call.1} parent=19 // pred_check
          %p264 = pneg %p121
        $region30: #{tpu_custom_call.1} parent=19 // pred_check_branch
          %266 = sbr.rel (%p264) target = $region32
        $region31: #{tpu_custom_call.1} parent=19 // pred_region
          %s267 = sand.u32 %s24, 1
          %s268 = scalar_lea.sflag [#allocation10], %s267
          %s269 = sand.u32 %s111, 1
          %s270 = smul.addr %s269, 8
          %s271 = scalar_lea.vmem [#allocation11], %s270
          %273 = vsyncadd %s268, 0
          %s274 = smul.addr %s31, 4
          %s275 = sadd.s32 %s33, %s274
          %s276 = smul.addr %s275, 4
          %s277 = scalar_lea.hbm %s2, %s276
          %s278 = sshll.u32 %s277, 4
          %s279 = int_to_ptr.hbm [resolvable:$true] %s278
          %s280 = sshll.u32 %s271, 4
          %s281 = int_to_ptr.vmem [resolvable:$true] %s280
          %286 = dma.hbm_to_vmem [thread:$0]  %s279, 128, %s281, %s268, 128, 64, 4
        $region32: #{tpu_custom_call.1} parent=19 // pred_fallthru
          _
        // Predicated region
        $region33: #{tpu_custom_call.1} parent=19 // pred_check
          %p287 = pneg %p149
        $region34: #{tpu_custom_call.1} parent=19 // pred_check_branch
          %289 = sbr.rel (%p287) target = $region36
        $region35: #{tpu_custom_call.1} parent=19 // pred_region
          %s290 = sand.u32 %s139, 1
          %s291 = scalar_lea.sflag [#allocation13], %s290
          %s292 = sand.u32 %s139, 1
          %s293 = smul.addr %s292, 16
          %s294 = scalar_lea.vmem [#allocation12], %s293
          %296 = vsyncadd %s291, 0
          %s297 = smul.addr %s31, 4
          %s298 = sadd.s32 %s32, %s297
          %s299 = smul.addr %s298, 8
          %s300 = scalar_lea.hbm %s3, %s299
          %s301 = sshll.u32 %s300, 4
          %s302 = int_to_ptr.hbm [resolvable:$true] %s301
          %s303 = sshll.u32 %s294, 4
          %s304 = int_to_ptr.vmem [resolvable:$true] %s303
          %309 = dma.hbm_to_vmem [thread:$0]  %s302, 256, %s304, %s291, 256, 128, 8
        $region36: #{tpu_custom_call.1} parent=19 // pred_fallthru
          _
      $region20: #{tpu_custom_call.1} parent=5 // pred_fallthru
        _
      %p310 = scmp.le.s32.totalorder 1, %s24
      %p311 = scmp.lt.s32.totalorder %s24, 9
      %p312 = pnand %p310, %p311
      %p313 = pneg %p312
      // Predicated region
      $region37: #{tpu_custom_call.1} parent=5 // pred_check
        _
      $region38: #{tpu_custom_call.1} parent=5 // pred_check_branch
        %315 = sbr.rel (%p312) target = $region40
      $region39: #{tpu_custom_call.1} parent=5 // pred_region
        %s316 = ssub.s32 %s24, 1
        %s317 = sand.u32 %s58, 1
        %s318 = scalar_lea.sflag [#allocation7], %s317
        %s319 = sand.u32 %s58, 1
        %s320 = scalar_lea.vmem [#allocation6], %s319
        // Predicated region
        $region41: #{tpu_custom_call.1} parent=39 // pred_check
          %p321 = pneg %p71
        $region42: #{tpu_custom_call.1} parent=39 // pred_check_branch
          %323 = sbr.rel (%p321) target = $region44
        $region43: #{tpu_custom_call.1} parent=39 // pred_region
          %325 = dma.done %s318, 16
        $region44: #{tpu_custom_call.1} parent=39 // pred_fallthru
          _
        %s326 = sand.u32 %s29, 1
        %s327 = scalar_lea.sflag [#allocation10], %s326
        %s328 = sand.u32 %s86, 1
        %s329 = scalar_lea.vmem [#allocation9], %s328
        // Predicated region
        $region45: #{tpu_custom_call.1} parent=39 // pred_check
          %p330 = pneg %p99
        $region46: #{tpu_custom_call.1} parent=39 // pred_check_branch
          %332 = sbr.rel (%p330) target = $region48
        $region47: #{tpu_custom_call.1} parent=39 // pred_region
          %334 = dma.done %s327, 16
        $region48: #{tpu_custom_call.1} parent=39 // pred_fallthru
          _
        %s335 = sand.u32 %s29, 1
        %s336 = scalar_lea.sflag [#allocation10], %s335
        %s337 = sand.u32 %s114, 1
        %s338 = smul.addr %s337, 8
        %s339 = scalar_lea.vmem [#allocation11], %s338
        // Predicated region
        $region49: #{tpu_custom_call.1} parent=39 // pred_check
          %p340 = pneg %p127
        $region50: #{tpu_custom_call.1} parent=39 // pred_check_branch
          %342 = sbr.rel (%p340) target = $region52
        $region51: #{tpu_custom_call.1} parent=39 // pred_region
          %344 = dma.done %s336, 128
        $region52: #{tpu_custom_call.1} parent=39 // pred_fallthru
          _
        %s345 = sand.u32 %s142, 1
        %s346 = scalar_lea.sflag [#allocation13], %s345
        %s347 = sand.u32 %s142, 1
        %s348 = smul.addr %s347, 16
        %s349 = scalar_lea.vmem [#allocation12], %s348
        // Predicated region
        $region53: #{tpu_custom_call.1} parent=39 // pred_check
          %p350 = pneg %p155
        $region54: #{tpu_custom_call.1} parent=39 // pred_check_branch
          %352 = sbr.rel (%p350) target = $region56
        $region55: #{tpu_custom_call.1} parent=39 // pred_region
          %354 = dma.done %s346, 256
        $region56: #{tpu_custom_call.1} parent=39 // pred_fallthru
          _
        %s355 = sand.u32 %s58, 1
        %s356 = scalar_lea.sflag [#allocation7], %s355
        %s357 = sand.u32 %s58, 1
        %s358 = scalar_lea.vmem [#allocation6], %s357
        %p359 = pneg %p71
        %p360 = pneg %p68
        %s361 = sand.u32 %s29, 1
        %s362 = scalar_lea.sflag [#allocation10], %s361
        %s363 = sand.u32 %s86, 1
        %s364 = scalar_lea.vmem [#allocation9], %s363
        %p365 = pneg %p99
        %p366 = pneg %p96
        %s367 = sand.u32 %s29, 1
        %s368 = scalar_lea.sflag [#allocation10], %s367
        %s369 = sand.u32 %s114, 1
        %s370 = smul.addr %s369, 8
        %s371 = scalar_lea.vmem [#allocation11], %s370
        %p372 = pneg %p127
        %p373 = pneg %p124
        %s374 = sand.u32 %s142, 1
        %s375 = scalar_lea.sflag [#allocation13], %s374
        %s376 = sand.u32 %s142, 1
        %s377 = smul.addr %s376, 16
        %s378 = scalar_lea.vmem [#allocation12], %s377
        %p379 = pneg %p155
        %p380 = pneg %p152
        %p381 = pneg %p176
        %p382 = pneg %p173
        %p383 = pneg %p204
        %p384 = pneg %p201
        %s385 = sand.u32 %s191, 1
        %s386 = scalar_lea.sflag [#allocation8], %s385
        %s387 = sand.u32 %s191, 1
        %s388 = smul.addr %s387, 16
        %s389 = scalar_lea.vmem [#allocation14], %s388
        %p391 = scmp.eq.s32.totalorder %s36, 0
        // Predicated region
        $region57: #{tpu_custom_call.1} parent=39 // pred_check
          %p392 = pneg %p391
        $region58: #{tpu_custom_call.1} parent=39 // pred_check_branch
          %394 = sbr.rel (%p392) target = $region60
        $region59: #{tpu_custom_call.1} parent=39 // pred_region
          %395 = vst [vmem:[#allocation2] sm:$0x1] -inf
          %396 = vst [vmem:[#allocation3] sm:$0x1] 0.0
          %397 = vst [vmem:[#allocation4] sm:$0xff] 0.0
          %398 = vst [vmem:[#allocation4 + $0x8] sm:$0xff] 0.0
        $region60: #{tpu_custom_call.1} parent=39 // pred_fallthru
          _
        %v399 = vld [vmem:[%s320] sm:$0x1]
        %v400 = vld [vmem:[%s329] sm:$0x1]
        %v401 = vld [vmem:[%s339] sm:$0xf]
        %v402 = vld [vmem:[%s339 + $0x4] sm:$0xf]
        %403 = vxpose.xlu0.c.b16.start [1/8] %v400, 128
        %404 = vxpose.xlu0.c.b16.cont [2/8] 0, 128
        %405 = vxpose.xlu0.c.b16.cont [3/8] 0, 128
        %406 = vxpose.xlu0.c.b16.cont [4/8] 0, 128
        %407 = vxpose.xlu0.c.b16.cont [5/8] 0, 128
        %408 = vxpose.xlu0.c.b16.cont [6/8] 0, 128
        %409 = vxpose.xlu0.c.b16.cont [7/8] 0, 128
        %410 = vxpose.xlu0.c.b16.end [8/8] 0, 128
        %v411 = vpop.trf.xlu0
        %v412 = vpop.trf.xlu0
        %v413 = vpop.trf.xlu0
        %v414 = vpop.trf.xlu0
        %v415 = vpop.trf.xlu0
        %v416 = vpop.trf.xlu0
        %v417 = vpop.trf.xlu0
        %v418 = vpop.trf.xlu0
        %vm419 = vcmask 15360
        %v421 = vsel %vm419, %v411, 0
        %v424 = vsel %vm419, %v412, 0
        %v427 = vsel %vm419, %v413, 0
        %v430 = vsel %vm419, %v414, 0
        %v433 = vsel %vm419, %v415, 0
        %v436 = vsel %vm419, %v416, 0
        %v439 = vsel %vm419, %v417, 0
        %v442 = vsel %vm419, %v418, 0
        %vm444 = vcmask 1040384
        %v446 = vsel %vm444, %v399, 0
        %448 = vmatpush.bf16.msra.mxu0 0
        %449 = vmatpush.bf16.msra.mxu0 0
        %450 = vmatpush.bf16.msra.mxu0 0
        %451 = vmatpush.bf16.msra.mxu0 0
        %452 = vmatpush.bf16.msra.mxu0 0
        %453 = vmatpush.bf16.msra.mxu0 0
        %454 = vmatpush.bf16.msra.mxu0 0
        %455 = vmatpush.bf16.msra.mxu0 %v446
        %456 = vmatmul.bf16.gmra.mxu0 %v421
        %v457 = vpop.f32.mrf.mxu0
        %v458 = vadd.f32 0.0, %v457
        %v459 = vpop.f32.mrf.mxu0
        %v460 = vadd.f32 0.0, %v459
        %461 = vmatmul.bf16.gmra.mxu0 %v424
        %v462 = vpop.f32.mrf.mxu0
        %v463 = vadd.f32 0.0, %v462
        %v464 = vpop.f32.mrf.mxu0
        %v465 = vadd.f32 0.0, %v464
        %466 = vmatmul.bf16.gmra.mxu0 %v427
        %v467 = vpop.f32.mrf.mxu0
        %v468 = vadd.f32 0.0, %v467
        %v469 = vpop.f32.mrf.mxu0
        %v470 = vadd.f32 0.0, %v469
        %471 = vmatmul.bf16.gmra.mxu0 %v430
        %v472 = vpop.f32.mrf.mxu0
        %v473 = vadd.f32 0.0, %v472
        %v474 = vpop.f32.mrf.mxu0
        %v475 = vadd.f32 0.0, %v474
        %476 = vmatmul.bf16.gmra.mxu0 %v433
        %v477 = vpop.f32.mrf.mxu0
        %v478 = vadd.f32 0.0, %v477
        %v479 = vpop.f32.mrf.mxu0
        %v480 = vadd.f32 0.0, %v479
        %481 = vmatmul.bf16.gmra.mxu0 %v436
        %v482 = vpop.f32.mrf.mxu0
        %v483 = vadd.f32 0.0, %v482
        %v484 = vpop.f32.mrf.mxu0
        %v485 = vadd.f32 0.0, %v484
        %486 = vmatmul.bf16.gmra.mxu0 %v439
        %v487 = vpop.f32.mrf.mxu0
        %v488 = vadd.f32 0.0, %v487
        %v489 = vpop.f32.mrf.mxu0
        %v490 = vadd.f32 0.0, %v489
        %491 = vmatmul.bf16.gmra.mxu0 %v442
        %v492 = vpop.f32.mrf.mxu0
        %v493 = vadd.f32 0.0, %v492
        %v494 = vpop.f32.mrf.mxu0
        %v495 = vadd.f32 0.0, %v494
        %496 = vdwg.mxu0
        %v497 = vld [vmem:[#allocation2] sm:$0x1]
        %v498 = vmax.f32 %v458, %v468
        %v499 = vmax.f32 %v460, %v470
        %v500 = vmax.f32 %v463, %v473
        %v501 = vmax.f32 %v465, %v475
        %v502 = vmax.f32 %v498, %v478
        %v503 = vmax.f32 %v499, %v480
        %v504 = vmax.f32 %v500, %v483
        %v505 = vmax.f32 %v501, %v485
        %v506 = vmax.f32 %v502, %v488
        %v507 = vmax.f32 %v503, %v490
        %v508 = vmax.f32 %v504, %v493
        %v509 = vmax.f32 %v505, %v495
        %v510 = vmax.f32 %v506, %v507
        %v511 = vmax.f32 %v508, %v509
        %v512 = vmax.f32 %v510, %v511
        %v513 = vrot.slane %v512, 4
        %v514 = vmax.f32 %v512, %v513
        %v515 = vrot.slane %v514, 2
        %v516 = vmax.f32 %v514, %v515
        %v517 = vrot.slane %v516, 1
        %v518 = vmax.f32 %v516, %v517
        %v519 = vmax.f32 %v497, %v518
        %v520 = vsub.f32 %v497, %v519
        %v521 = vmul.f32 %v520, 1.442695
        %v522 = vpow.pop %v521
        %v524 = vperm.slane %v519, 0
        %v526 = vsub.f32 %v458, %v524
        %v527 = vsub.f32 %v460, %v524
        %v528 = vsub.f32 %v463, %v524
        %v529 = vsub.f32 %v465, %v524
        %v530 = vsub.f32 %v468, %v524
        %v531 = vsub.f32 %v470, %v524
        %v532 = vsub.f32 %v473, %v524
        %v533 = vsub.f32 %v475, %v524
        %v534 = vsub.f32 %v478, %v524
        %v535 = vsub.f32 %v480, %v524
        %v536 = vsub.f32 %v483, %v524
        %v537 = vsub.f32 %v485, %v524
        %v538 = vsub.f32 %v488, %v524
        %v539 = vsub.f32 %v490, %v524
        %v540 = vsub.f32 %v493, %v524
        %v541 = vsub.f32 %v495, %v524
        %v542 = vpack.c.bf16 %v527, %v526
        %v543 = vpack.c.bf16 %v529, %v528
        %v544 = vpack.c.bf16 %v531, %v530
        %v545 = vpack.c.bf16 %v533, %v532
        %v546 = vpack.c.bf16 %v535, %v534
        %v547 = vpack.c.bf16 %v537, %v536
        %v548 = vpack.c.bf16 %v539, %v538
        %v549 = vpack.c.bf16 %v541, %v540
        %v550 = vunpack.c.l.bf16 %v542
        %v551 = vunpack.c.h.bf16 %v542
        %v552 = vunpack.c.l.bf16 %v543
        %v553 = vunpack.c.h.bf16 %v543
        %v554 = vunpack.c.l.bf16 %v544
        %v555 = vunpack.c.h.bf16 %v544
        %v556 = vunpack.c.l.bf16 %v545
        %v557 = vunpack.c.h.bf16 %v545
        %v558 = vunpack.c.l.bf16 %v546
        %v559 = vunpack.c.h.bf16 %v546
        %v560 = vunpack.c.l.bf16 %v547
        %v561 = vunpack.c.h.bf16 %v547
        %v562 = vunpack.c.l.bf16 %v548
        %v563 = vunpack.c.h.bf16 %v548
        %v564 = vunpack.c.l.bf16 %v549
        %v565 = vunpack.c.h.bf16 %v549
        %v566 = vmul.f32 %v550, 1.442695
        %v567 = vpow.pop %v566
        %v568 = vmul.f32 %v551, 1.442695
        %v569 = vpow.pop %v568
        %v570 = vmul.f32 %v552, 1.442695
        %v571 = vpow.pop %v570
        %v572 = vmul.f32 %v553, 1.442695
        %v573 = vpow.pop %v572
        %v574 = vmul.f32 %v554, 1.442695
        %v575 = vpow.pop %v574
        %v576 = vmul.f32 %v555, 1.442695
        %v577 = vpow.pop %v576
        %v578 = vmul.f32 %v556, 1.442695
        %v579 = vpow.pop %v578
        %v580 = vmul.f32 %v557, 1.442695
        %v581 = vpow.pop %v580
        %v582 = vmul.f32 %v558, 1.442695
        %v583 = vpow.pop %v582
        %v584 = vmul.f32 %v559, 1.442695
        %v585 = vpow.pop %v584
        %v586 = vmul.f32 %v560, 1.442695
        %v587 = vpow.pop %v586
        %v588 = vmul.f32 %v561, 1.442695
        %v589 = vpow.pop %v588
        %v590 = vmul.f32 %v562, 1.442695
        %v591 = vpow.pop %v590
        %v592 = vmul.f32 %v563, 1.442695
        %v593 = vpow.pop %v592
        %v594 = vmul.f32 %v564, 1.442695
        %v595 = vpow.pop %v594
        %v596 = vmul.f32 %v565, 1.442695
        %v597 = vpow.pop %v596
        %v598 = vpack.c.bf16 %v569, %v567
        %v599 = vpack.c.bf16 %v573, %v571
        %v600 = vpack.c.bf16 %v577, %v575
        %v601 = vpack.c.bf16 %v581, %v579
        %v602 = vpack.c.bf16 %v585, %v583
        %v603 = vpack.c.bf16 %v589, %v587
        %v604 = vpack.c.bf16 %v593, %v591
        %v605 = vpack.c.bf16 %v597, %v595
        %v606 = vld [vmem:[#allocation3] sm:$0x1]
        %v607 = vmul.f32 %v522, %v606
        %v608 = vunpack.c.l.bf16 %v598
        %v609 = vunpack.c.h.bf16 %v598
        %v610 = vunpack.c.l.bf16 %v599
        %v611 = vunpack.c.h.bf16 %v599
        %v612 = vunpack.c.l.bf16 %v600
        %v613 = vunpack.c.h.bf16 %v600
        %v614 = vunpack.c.l.bf16 %v601
        %v615 = vunpack.c.h.bf16 %v601
        %v616 = vunpack.c.l.bf16 %v602
        %v617 = vunpack.c.h.bf16 %v602
        %v618 = vunpack.c.l.bf16 %v603
        %v619 = vunpack.c.h.bf16 %v603
        %v620 = vunpack.c.l.bf16 %v604
        %v621 = vunpack.c.h.bf16 %v604
        %v622 = vunpack.c.l.bf16 %v605
        %v623 = vunpack.c.h.bf16 %v605
        %v624 = vadd.f32 %v608, %v609
        %v625 = vadd.f32 %v624, %v610
        %v626 = vadd.f32 %v625, %v611
        %v627 = vadd.f32 %v626, %v612
        %v628 = vadd.f32 %v627, %v613
        %v629 = vadd.f32 %v628, %v614
        %v630 = vadd.f32 %v629, %v615
        %v631 = vadd.f32 %v630, %v616
        %v632 = vadd.f32 %v631, %v617
        %v633 = vadd.f32 %v632, %v618
        %v634 = vadd.f32 %v633, %v619
        %v635 = vadd.f32 %v634, %v620
        %v636 = vadd.f32 %v635, %v621
        %v637 = vadd.f32 %v636, %v622
        %v638 = vadd.f32 %v637, %v623
        %v639 = vrot.slane %v638, 4
        %v640 = vadd.f32 %v638, %v639
        %v641 = vrot.slane %v640, 2
        %v642 = vadd.f32 %v640, %v641
        %v643 = vrot.slane %v642, 1
        %v644 = vadd.f32 %v642, %v643
        %v645 = vadd.f32 %v607, %v644
        %646 = vst [vmem:[#allocation3] sm:$0x1] %v645
        %v647 = vld [vmem:[#allocation4] sm:$0xff]
        %v648 = vld [vmem:[#allocation4 + $0x8] sm:$0xff]
        %v650 = vperm.slane %v522, 0
        %v652 = vmul.f32 %v650, %v647
        %v653 = vmul.f32 %v650, %v648
        %v656 = vunpack.c.l.b16 %v401
        %v657 = vunpack.c.l.b16 %v402
        %v658 = vpack.c.b16 %v657, %v656
        %660 = vmatpush.bf16.msra.mxu0 %v605
        %661 = vmatpush.bf16.msra.mxu0 %v604
        %662 = vmatpush.bf16.msra.mxu0 %v603
        %663 = vmatpush.bf16.msra.mxu0 %v602
        %664 = vmatpush.bf16.msra.mxu0 %v601
        %665 = vmatpush.bf16.msra.mxu0 %v600
        %666 = vmatpush.bf16.msra.mxu0 %v599
        %667 = vmatpush.bf16.msra.mxu0 %v598
        %668 = vmatmul.bf16.gmra.mxu0 %v658
        %v669 = vpop.f32.mrf.mxu0
        %v670 = vadd.f32 0.0, %v669
        %v671 = vpop.f32.mrf.mxu0
        %v672 = vadd.f32 0.0, %v671
        %673 = vdwg.mxu0
        %v674 = vadd.f32 %v652, %v670
        %v675 = vadd.f32 %v653, %v672
        %676 = vst [vmem:[#allocation4] sm:$0xff] %v674
        %677 = vst [vmem:[#allocation4 + $0x8] sm:$0xff] %v675
        %678 = vst [vmem:[#allocation2] sm:$0x1] %v519
        %p679 = scmp.eq.s32.totalorder %s36, 1
        // Predicated region
        $region61: #{tpu_custom_call.1} parent=39 // pred_check
          %p680 = pneg %p679
        $region62: #{tpu_custom_call.1} parent=39 // pred_check_branch
          %682 = sbr.rel (%p680) target = $region64
        $region63: #{tpu_custom_call.1} parent=39 // pred_region
          %v683 = vld [vmem:[#allocation3] sm:$0x1]
          %v684 = vrcp.pop %v683
          %v685 = vld [vmem:[#allocation4] sm:$0xff]
          %v686 = vld [vmem:[#allocation4 + $0x8] sm:$0xff]
          %v688 = vperm.slane %v684, 0
          %v690 = vmul.f32 %v685, %v688
          %v691 = vmul.f32 %v686, %v688
          %s692 = sld [smem:[#allocation5]]
          %v693 = vstv %s692
          %v694 = vmul.f32 %v693, %v690
          %v695 = vmul.f32 %v693, %v691
          %v696 = vld [vmem:[%s349] sm:$0xff]
          %v697 = vld [vmem:[%s349 + $0x8] sm:$0xff]
          %v698 = vadd.f32 %v694, %v696
          %v699 = vadd.f32 %v695, %v697
          %700 = vst [vmem:[%s389] sm:$0xff] %v698
          %701 = vst [vmem:[%s389 + $0x8] sm:$0xff] %v699
        $region64: #{tpu_custom_call.1} parent=39 // pred_fallthru
          _
        %s702 = sand.u32 %s191, 1
        %s703 = scalar_lea.sflag [#allocation8], %s702
        %s704 = sand.u32 %s191, 1
        %s705 = smul.addr %s704, 16
        %s706 = scalar_lea.vmem [#allocation14], %s705
        // Predicated region
        $region65: #{tpu_custom_call.1} parent=39 // pred_check
          %p707 = pneg %p201
        $region66: #{tpu_custom_call.1} parent=39 // pred_check_branch
          %709 = sbr.rel (%p707) target = $region68
        $region67: #{tpu_custom_call.1} parent=39 // pred_region
          %711 = vsyncadd %s703, 0
          %s712 = smul.addr %s34, 4
          %s713 = sadd.s32 %s35, %s712
          %s714 = smul.addr %s713, 8
          %s715 = scalar_lea.hbm %s5, %s714
          %s716 = sshll.u32 %s706, 4
          %s717 = int_to_ptr.vmem [resolvable:$true] %s716
          %s718 = sshll.u32 %s715, 4
          %s719 = int_to_ptr.hbm [resolvable:$true] %s718
          %724 = dma.vmem_to_hbm [thread:$0]  %s717, 256, %s719, %s703, 128, 256, 8
        $region68: #{tpu_custom_call.1} parent=39 // pred_fallthru
          _
      $region40: #{tpu_custom_call.1} parent=5 // pred_fallthru
        _
      %p725 = scmp.le.s32.totalorder 2, %s24
      // Predicated region
      $region69: #{tpu_custom_call.1} parent=5 // pred_check
        %p726 = pneg %p725
      $region70: #{tpu_custom_call.1} parent=5 // pred_check_branch
        %728 = sbr.rel (%p726) target = $region72
      $region71: #{tpu_custom_call.1} parent=5 // pred_region
        %s729 = ssub.s32 %s24, 2
        // Predicated region
        $region73: #{tpu_custom_call.1} parent=71 // pred_check
          %p730 = pneg %p207
        $region74: #{tpu_custom_call.1} parent=71 // pred_check_branch
          %732 = sbr.rel (%p730) target = $region76
        $region75: #{tpu_custom_call.1} parent=71 // pred_region
          %s733 = sand.u32 %s192, 1
          %s734 = scalar_lea.sflag [#allocation8], %s733
          %s735 = sand.u32 %s192, 1
          %s736 = smul.addr %s735, 16
          %s737 = scalar_lea.vmem [#allocation14], %s736
          %739 = dma.done %s734, 256
        $region76: #{tpu_custom_call.1} parent=71 // pred_fallthru
          _
      $region72: #{tpu_custom_call.1} parent=5 // pred_fallthru
        _
    $region6: #{tpu_custom_call.1} parent=1 // loop_footer
      %s28 = sadd.s32 1, %s24
    $region7: #{tpu_custom_call.1} parent=1 // loop_footer_branch
      %23 = sbr.rel target = $region3
    $region8: #{tpu_custom_call.1} parent=1 // loop_exit
      _
    %740 = vsyncpa [#allocation7], 1
    %s741 = scalar_lea.sflag [#allocation7], 1
    %742 = vsyncpa %s741, 1
    %743 = vsyncpa [#allocation10], 1
    %s744 = scalar_lea.sflag [#allocation10], 1
    %745 = vsyncpa %s744, 1
    %746 = vsyncpa [#allocation13], 1
    %s747 = scalar_lea.sflag [#allocation13], 1
    %748 = vsyncpa %s747, 1
    %749 = vsyncpa [#allocation8], 1
    %s750 = scalar_lea.sflag [#allocation8], 1
    %751 = vsyncpa %s750, 1

</llo_original>
